<compile_context>
chip_gen: v5e
topology: v5e:2x2
jax: 0.10.0
libtpu: 0.0.40
codegen_flags: <defaults>
</compile_context>

<pallas_src>
import functools

import jax
import jax.numpy as jnp
from jax.experimental import pallas as pl
from jax.experimental.pallas import tpu as pltpu

_LANES = 128
_SUBLANE = 8
_TARGET_BLOCK_BYTES = 8 << 20  # ~8 MiB per input block


def _grid_cell_kernel(gen_ref, tgt_ref, out_ref, *, use_weights,
                      precip_weight_cap, valid_rows_last, num_blocks):
    tm = gen_ref.shape[0]
    g = gen_ref[...].astype(jnp.float32)
    t = tgt_ref[...].astype(jnp.float32)
    diff = g - t
    if use_weights:
        # weight_fn(y, cap) = clamp(y, 0, cap)   (DGMR precipitation weighting)
        # TODO(synk): arbitrary user weight_fn is not representable; only the
        # standard clamp weighting is implemented.
        diff = diff * jnp.clip(t, 0.0, precip_weight_cap)
    a = jnp.abs(diff)

    if valid_rows_last != tm:
        # The last grid block is ragged: rows past the end of the array hold
        # unspecified (stale) VMEM data, so mask them to zero.  valid_rows_last
        # is a Python constant -> pure VALU compare/select, no scalar prefetch.
        rows = jax.lax.broadcasted_iota(jnp.int32, a.shape, 0)
        limit = jnp.where(pl.program_id(0) == num_blocks - 1,
                          valid_rows_last, tm)
        a = jnp.where(rows < limit, a, 0.0)

    # Per-block lane-dense (8, 128) partial sum: pure whole-vreg VALU adds
    # (no cross-lane reduce).  Final reduction happens once in the wrapper, so
    # the grid axis stays fully parallel (no resident accumulator).
    out_ref[...] = jnp.sum(a.reshape(tm // _SUBLANE, _SUBLANE, _LANES), axis=0)


def _round_up(x, m):
    return ((x + m - 1) // m) * m


def grid_cell_loss(generated_images, targets, *, use_weights=False,
                   precip_weight_cap=24.0, tile_rows=None,
                   vmem_limit_bytes=40 << 20):
    """Pallas implementation of GridCellLoss.forward.

    generated_images, targets: [B, T, C, H, W] arrays of equal shape.
    """
    assert generated_images.shape == targets.shape
    B, T, C, H, W = targets.shape

    flat_g = generated_images.reshape(-1)
    flat_t = targets.reshape(-1)
    total = flat_g.size

    g_item = jnp.dtype(flat_g.dtype).itemsize
    t_item = jnp.dtype(flat_t.dtype).itemsize
    # Sublane packing: 8 for 4-byte, 16 for 2-byte, 32 for 1-byte dtypes.
    packing = 32 // min(g_item, t_item)
    if tile_rows is None:
        # Dtype-aware: constant block *byte* size (~8 MiB per input).
        rows = _TARGET_BLOCK_BYTES // (_LANES * max(g_item, t_item))
        tile_rows = max(packing, (rows // packing) * packing)
    assert tile_rows % packing == 0 and tile_rows >= packing

    # Tiny inputs: a kernel launch is not worth it -- pure jnp.
    if total < packing * _LANES:
        gf = flat_g.astype(jnp.float32)
        tf = flat_t.astype(jnp.float32)
        diff = gf - tf
        if use_weights:
            diff = diff * jnp.clip(tf, 0.0, precip_weight_cap)
        return jnp.sum(jnp.abs(diff)) / T * H * W

    rem = total % _LANES
    if rem:
        # Fallback only for non-lane-aligned sizes: pad with <128 zeros
        # (zero padding contributes exactly 0 to the weighted/unweighted L1).
        pad = _LANES - rem
        flat_g = jnp.pad(flat_g, (0, pad))
        flat_t = jnp.pad(flat_t, (0, pad))
    m_rows = flat_g.size // _LANES  # lane-aligned; NOT padded to block size

    # Zero-copy (bitcast) reshape into a lane-dense slab.
    gen2 = flat_g.reshape(m_rows, _LANES)
    tgt2 = flat_t.reshape(m_rows, _LANES)

    # Block rows: multiple of `packing`, never larger than the array.
    tm = min(tile_rows, (m_rows // packing) * packing)
    if tm >= m_rows and m_rows > packing:
        # Would be a single block: split in two so both v7x TensorCores work.
        tm = _round_up(-(-m_rows // 2), packing)
        tm = min(tm, (m_rows // packing) * packing)
    num_blocks = -(-m_rows // tm)
    valid_rows_last = m_rows - (num_blocks - 1) * tm  # rows valid in last block

    kern = functools.partial(
        _grid_cell_kernel,
        use_weights=use_weights,
        precip_weight_cap=precip_weight_cap,
        valid_rows_last=valid_rows_last,
        num_blocks=num_blocks,
    )

    n_elems = m_rows * _LANES
    cost = pl.CostEstimate(
        flops=n_elems * (5 if use_weights else 3),
        transcendentals=0,
        bytes_accessed=n_elems * (g_item + t_item)
        + num_blocks * _SUBLANE * _LANES * 4,
    )

    partials = pl.pallas_call(
        kern,
        out_shape=jax.ShapeDtypeStruct((num_blocks * _SUBLANE, _LANES),
                                       jnp.float32),
        grid_spec=pltpu.PrefetchScalarGridSpec(
            num_scalar_prefetch=0,
            grid=(num_blocks,),
            in_specs=[
                pl.BlockSpec((tm, _LANES), lambda i: (i, 0)),
                pl.BlockSpec((tm, _LANES), lambda i: (i, 0)),
            ],
            out_specs=pl.BlockSpec((_SUBLANE, _LANES), lambda i: (i, 0)),
        ),
        compiler_params=pltpu.CompilerParams(
            dimension_semantics=("parallel",),
            vmem_limit_bytes=vmem_limit_bytes),
        cost_estimate=cost,
    )(gen2, tgt2)

    total_l1 = jnp.sum(partials, dtype=jnp.float32)

    # PyTorch: difference / targets.size(1) * targets.size(3) * targets.size(4)
    # -> left-to-right: ((sum / T) * H) * W
    return total_l1 / T * H * W


def _reference_loss(generated_images, targets, *, use_weights=False,
                    precip_weight_cap=24.0):
    B, T, C, H, W = targets.shape
    g = generated_images.astype(jnp.float32)
    t = targets.astype(jnp.float32)
    diff = g - t
    if use_weights:
        diff = diff * jnp.clip(t, 0.0, precip_weight_cap)
    return jnp.sum(jnp.abs(diff)) / T * H * W


if __name__ == "__main__":
    key = jax.random.PRNGKey(0)
    k1, k2 = jax.random.split(key)

    # [B, T, C, H, W] -- lane-aligned f32 case (no padding, 2 parallel blocks)
    B, T, C, H, W = 2, 8, 1, 16, 16
    generated = jax.random.normal(k1, (B, T, C, H, W), dtype=jnp.float32)
    targets = jnp.abs(jax.random.normal(k2, (B, T, C, H, W), dtype=jnp.float32))

    # default module config: weight_fn=None -> unweighted L1
    loss = jax.block_until_ready(
        grid_cell_loss(generated, targets, use_weights=False))
    ref = _reference_loss(generated, targets, use_weights=False)
    assert jnp.allclose(loss, ref, rtol=1e-5, atol=1e-5), (loss, ref)

    # weighted path (weight_fn = clamp(y, 0, cap))
    wloss = jax.block_until_ready(
        grid_cell_loss(generated, targets, use_weights=True,
                       precip_weight_cap=24.0))
    wref = _reference_loss(generated, targets, use_weights=True,
                           precip_weight_cap=24.0)
    assert jnp.allclose(wloss, wref, rtol=1e-5, atol=1e-5), (wloss, wref)

    # bf16, non-lane-aligned shape: exercises the small-pad fallback AND the
    # in-kernel ragged-last-block mask path.
    B2, T2, C2, H2, W2 = 2, 3, 1, 17, 23
    g2 = jax.random.normal(k1, (B2, T2, C2, H2, W2), dtype=jnp.bfloat16)
    t2 = jnp.abs(jax.random.normal(k2, (B2, T2, C2, H2, W2),
                                   dtype=jnp.bfloat16))
    loss2 = jax.block_until_ready(grid_cell_loss(g2, t2, use_weights=True))
    ref2 = _reference_loss(g2, t2, use_weights=True)
    assert jnp.allclose(loss2, ref2, rtol=1e-2, atol=1e-2), (loss2, ref2)

    # tiny input: pure-jnp fallback path
    g3 = jax.random.normal(k1, (1, 1, 1, 5, 7), dtype=jnp.float32)
    t3 = jnp.abs(jax.random.normal(k2, (1, 1, 1, 5, 7), dtype=jnp.float32))
    loss3 = jax.block_until_ready(grid_cell_loss(g3, t3, use_weights=False))
    ref3 = _reference_loss(g3, t3, use_weights=False)
    assert jnp.allclose(loss3, ref3, rtol=1e-5, atol=1e-5), (loss3, ref3)

    print("KERNEL_OK")
</pallas_src>

<mosaic_0001>
module attributes {stable_mosaic.version = 11 : i64} {
  func.func @_grid_cell_kernel(%arg0: i32, %arg1: memref<16x128xf32, #tpu.memory_space<vmem>>, %arg2: memref<16x128xf32, #tpu.memory_space<vmem>>, %arg3: memref<8x128xf32, #tpu.memory_space<vmem>>) attributes {dimension_semantics = [#tpu.dimension_semantics<parallel>], iteration_bounds = array<i64: 2>, scalar_prefetch = 0 : i64, scratch_operands = 0 : i64, tpu.core_type = #tpu.core_type<tc>, window_params = [{transform_indices = @transform_0, window_bounds = array<i64: 16, 128>}, {transform_indices = @transform_1, window_bounds = array<i64: 16, 128>}, {transform_indices = @transform_2, window_bounds = array<i64: 8, 128>}]} {
    %c0 = arith.constant 0 : index
    %c0_0 = arith.constant 0 : index
    %0 = vector.load %arg1[%c0, %c0_0] : memref<16x128xf32, #tpu.memory_space<vmem>>, vector<16x128xf32>
    %c0_1 = arith.constant 0 : index
    %c0_2 = arith.constant 0 : index
    %1 = vector.load %arg2[%c0_1, %c0_2] : memref<16x128xf32, #tpu.memory_space<vmem>>, vector<16x128xf32>
    %2 = arith.subf %0, %1 : vector<16x128xf32>
    %3 = math.absf %2 : vector<16x128xf32>
    %4 = vector.shape_cast %3 : vector<16x128xf32> to vector<2x8x128xf32>
    %cst = arith.constant dense<0.000000e+00> : vector<8x128xf32>
    %5 = vector.multi_reduction <add>, %4, %cst [0] : vector<2x8x128xf32> to vector<8x128xf32>
    %c0_3 = arith.constant 0 : index
    %c0_4 = arith.constant 0 : index
    %6 = vector.load %arg3[%c0_3, %c0_4] : memref<8x128xf32, #tpu.memory_space<vmem>>, vector<8x128xf32>
    tpu.vector_store %arg3[%c0_3, %c0_4], %5 {strides = array<i32>} : memref<8x128xf32, #tpu.memory_space<vmem>>, vector<8x128xf32>,
    return
  }
  func.func @transform_0(%arg0: i32) -> (i32, i32) {
    %c0_i32 = arith.constant 0 : i32
    %c0_i32_0 = arith.constant 0 : i32
    return %arg0, %c0_i32 : i32, i32
  }
  func.func @transform_1(%arg0: i32) -> (i32, i32) {
    %c0_i32 = arith.constant 0 : i32
    %c0_i32_0 = arith.constant 0 : i32
    return %arg0, %c0_i32 : i32, i32
  }
  func.func @transform_2(%arg0: i32) -> (i32, i32) {
    %c0_i32 = arith.constant 0 : i32
    %c0_i32_0 = arith.constant 0 : i32
    return %arg0, %c0_i32 : i32, i32
  }
}

</mosaic_0001>

<llo_original>
// kernel: tpu_custom_call.1
$region0: #{tpu_custom_call.1}
  #allocation0 [shape = 'u32[]', space=smem, size = 0x4, offset = 0x4, fixed_abs, tag = 'smem constant byte address 0x4 - core index']
  #allocation1 [shape = 'u32[72,128]{1,0:T(1,128)}', space=vmem, size = 0x9000, scoped, tag = 'internal scratch']
  %s0 = inlined_call_operand.hbm [shape: f32[32,128], index: 0, kind: input, shape index: {}]
  %s1 = inlined_call_operand.hbm [shape: f32[32,128], index: 1, kind: input, shape index: {}]
  %s2 = inlined_call_operand.hbm [shape: f32[16,128], index: 2, kind: output, shape index: {}]
  %s3 = sld [smem:[#allocation0]]
  $region49: #{tpu_custom_call.1} parent=0
    _
  %s5 = ssub.s32 1, %s3
  %s6 = scalar_select 0, %s5, %s3
  $region1: #{tpu_custom_call.1} parent=0
    #allocation2 [shape = 'u8[16384]{0}', space=vmem, size = 0x4000, scoped, tag = 'input window, operand 0']
    #allocation3 [shape = 's32[2]{0}', space=sflag, size = 0x8, scoped, tag = 'scoped memory for tpu_custom_call.1']
    #allocation4 [shape = 's32[2]{0}', space=sflag, size = 0x8, scoped, tag = 'scoped memory for tpu_custom_call.1']
    #allocation5 [shape = 'u8[16384]{0}', space=vmem, size = 0x4000, scoped, tag = 'input window, operand 1']
    #allocation6 [shape = 's32[2]{0}', space=sflag, size = 0x8, scoped, tag = 'scoped memory for tpu_custom_call.1']
    #allocation7 [shape = 'u8[8192]{0}', space=vmem, size = 0x2000, scoped, tag = 'output window, operand 0']
    %7 = vsyncpa [#allocation3], 0
    %s8 = scalar_lea.sflag [#allocation3], 1
    %9 = vsyncpa %s8, 0
    %10 = vsyncpa [#allocation6], 0
    %s11 = scalar_lea.sflag [#allocation6], 1
    %12 = vsyncpa %s11, 0
    %13 = vsyncpa [#allocation4], 0
    %s14 = scalar_lea.sflag [#allocation4], 1
    %15 = vsyncpa %s14, 0
    loop: start=0, step=1, limit=4
    $region2: #{tpu_custom_call.1} parent=1 // loop_pre_header
      _
    $region3: #{tpu_custom_call.1} parent=1 // loop_header
      %s17 = sphi 0, %s21
      %p18 = scmp.ge.s32.totalorder %s17, 4
      %s27 = sphi 0, %s29
      %s30 = sphi 0, %s27
      %s31 = sphi 0, %s30
      %s47 = sphi 0, %s31
      %s53 = sphi 0, %s55
      %s56 = sphi 0, %s53
      %s57 = sphi 0, %s56
      %s73 = sphi 0, %s57
      %s79 = sphi 0, %s81
      %s82 = sphi 0, %s79
      %s83 = sphi 0, %s82
      %s99 = sphi 0, %s83
    $region4: #{tpu_custom_call.1} parent=1 // loop_header_branch
      %20 = sbr.rel (%p18) target = $region8
    $region5: #{tpu_custom_call.1} parent=1 // loop_body
      %s22 = ssub.s32 %s17, 1
      %s23 = ssub.s32 %s17, 2
      %s24 = sadd.s32 %s17, 1
      %s25 = ssub.s32 %s17, %s24
      %p26 = scmp.eq.s32.totalorder %s25, 0
      %s28 = sadd.s32 %s27, 1
      %s29 = scalar_select %p26, %s27, %s28
      %p32 = pneg %p26
      %p33 = scmp.eq.s32.totalorder %s17, 1
      %p34 = por %p32, %p33
      %p35 = scmp.ne.s32.totalorder %s27, %s30
      %p36 = scmp.eq.s32.totalorder %s17, 0
      %p37 = por %p35, %p36
      %p38 = scmp.ne.s32.totalorder %s27, %s30
      %p39 = scmp.eq.s32.totalorder %s22, 1
      %p40 = por %p38, %p39
      %p41 = scmp.ne.s32.totalorder %s30, %s31
      %p42 = scmp.eq.s32.totalorder %s22, 0
      %p43 = por %p41, %p42
      %p44 = scmp.ne.s32.totalorder %s30, %s31
      %p45 = scmp.eq.s32.totalorder %s23, 1
      %p46 = por %p44, %p45
      %p48 = scmp.ne.s32.totalorder %s31, %s47
      %p49 = scmp.eq.s32.totalorder %s23, 0
      %p50 = por %p48, %p49
      %s51 = ssub.s32 %s17, %s24
      %p52 = scmp.eq.s32.totalorder %s51, 0
      %s54 = sadd.s32 %s53, 1
      %s55 = scalar_select %p52, %s53, %s54
      %p58 = pneg %p52
      %p59 = scmp.eq.s32.totalorder %s17, 1
      %p60 = por %p58, %p59
      %p61 = scmp.ne.s32.totalorder %s53, %s56
      %p62 = scmp.eq.s32.totalorder %s17, 0
      %p63 = por %p61, %p62
      %p64 = scmp.ne.s32.totalorder %s53, %s56
      %p65 = scmp.eq.s32.totalorder %s22, 1
      %p66 = por %p64, %p65
      %p67 = scmp.ne.s32.totalorder %s56, %s57
      %p68 = scmp.eq.s32.totalorder %s22, 0
      %p69 = por %p67, %p68
      %p70 = scmp.ne.s32.totalorder %s56, %s57
      %p71 = scmp.eq.s32.totalorder %s23, 1
      %p72 = por %p70, %p71
      %p74 = scmp.ne.s32.totalorder %s57, %s73
      %p75 = scmp.eq.s32.totalorder %s23, 0
      %p76 = por %p74, %p75
      %s77 = ssub.s32 %s17, %s24
      %p78 = scmp.eq.s32.totalorder %s77, 0
      %s80 = sadd.s32 %s79, 1
      %s81 = scalar_select %p78, %s79, %s80
      %p84 = pneg %p78
      %p85 = scmp.eq.s32.totalorder %s17, 1
      %p86 = por %p84, %p85
      %p87 = scmp.ne.s32.totalorder %s79, %s82
      %p88 = scmp.eq.s32.totalorder %s17, 0
      %p89 = por %p87, %p88
      %p90 = scmp.ne.s32.totalorder %s79, %s82
      %p91 = scmp.eq.s32.totalorder %s22, 1
      %p92 = por %p90, %p91
      %p93 = scmp.ne.s32.totalorder %s82, %s83
      %p94 = scmp.eq.s32.totalorder %s22, 0
      %p95 = por %p93, %p94
      %p96 = scmp.ne.s32.totalorder %s82, %s83
      %p97 = scmp.eq.s32.totalorder %s23, 1
      %p98 = por %p96, %p97
      %p100 = scmp.ne.s32.totalorder %s83, %s99
      %p101 = scmp.eq.s32.totalorder %s23, 0
      %p102 = por %p100, %p101
      %p103 = scmp.le.s32.totalorder 1, %s17
      %p104 = scmp.lt.s32.totalorder %s17, 3
      %p105 = pnand %p103, %p104
      %p106 = pneg %p105
      // Predicated region
      $region9: #{tpu_custom_call.1} parent=5 // pred_check
        _
      $region10: #{tpu_custom_call.1} parent=5 // pred_check_branch
        %108 = sbr.rel (%p105) target = $region12
      $region11: #{tpu_custom_call.1} parent=5 // pred_region
        %s109 = ssub.s32 %s17, 1
      $region12: #{tpu_custom_call.1} parent=5 // pred_fallthru
        _
      %p110 = scmp.lt.s32.totalorder %s17, 2
      // Predicated region
      $region13: #{tpu_custom_call.1} parent=5 // pred_check
        %p111 = pneg %p110
      $region14: #{tpu_custom_call.1} parent=5 // pred_check_branch
        %113 = sbr.rel (%p111) target = $region16
      $region15: #{tpu_custom_call.1} parent=5 // pred_region
        // Predicated region
        $region17: #{tpu_custom_call.1} parent=15 // pred_check
          %p114 = pneg %p37
        $region18: #{tpu_custom_call.1} parent=15 // pred_check_branch
          %116 = sbr.rel (%p114) target = $region20
        $region19: #{tpu_custom_call.1} parent=15 // pred_region
          %s117 = sand.u32 %s27, 1
          %s118 = scalar_lea.sflag [#allocation3], %s117
          %s119 = sand.u32 %s27, 1
          %s120 = smul.addr %s119, 16
          %s121 = scalar_lea.vmem [#allocation2], %s120
          %s122 = smul.u32 2, %s17
          %124 = vsyncadd %s118, 0
          %s125 = smul.addr %s122, 8
          %s126 = scalar_lea.hbm %s0, %s125
          %s127 = sshll.u32 %s126, 4
          %s128 = int_to_ptr.hbm [resolvable:$true] %s127
          %s129 = sshll.u32 %s121, 4
          %s130 = int_to_ptr.vmem [resolvable:$true] %s129
          %135 = dma.hbm_to_vmem [thread:$0]  %s128, 256, %s130, %s118, 128, 128, 8
        $region20: #{tpu_custom_call.1} parent=15 // pred_fallthru
          _
        // Predicated region
        $region21: #{tpu_custom_call.1} parent=15 // pred_check
          %p136 = pneg %p63
        $region22: #{tpu_custom_call.1} parent=15 // pred_check_branch
          %138 = sbr.rel (%p136) target = $region24
        $region23: #{tpu_custom_call.1} parent=15 // pred_region
          %s139 = sand.u32 %s53, 1
          %s140 = scalar_lea.sflag [#allocation6], %s139
          %s141 = sand.u32 %s53, 1
          %s142 = smul.addr %s141, 16
          %s143 = scalar_lea.vmem [#allocation5], %s142
          %s144 = smul.u32 2, %s17
          %146 = vsyncadd %s140, 0
          %s147 = smul.addr %s144, 8
          %s148 = scalar_lea.hbm %s1, %s147
          %s149 = sshll.u32 %s148, 4
          %s150 = int_to_ptr.hbm [resolvable:$true] %s149
          %s151 = sshll.u32 %s143, 4
          %s152 = int_to_ptr.vmem [resolvable:$true] %s151
          %157 = dma.hbm_to_vmem [thread:$0]  %s150, 256, %s152, %s140, 128, 128, 8
        $region24: #{tpu_custom_call.1} parent=15 // pred_fallthru
          _
      $region16: #{tpu_custom_call.1} parent=5 // pred_fallthru
        _
      %p158 = scmp.le.s32.totalorder 1, %s17
      %p159 = scmp.lt.s32.totalorder %s17, 3
      %p160 = pnand %p158, %p159
      %p161 = pneg %p160
      // Predicated region
      $region25: #{tpu_custom_call.1} parent=5 // pred_check
        _
      $region26: #{tpu_custom_call.1} parent=5 // pred_check_branch
        %163 = sbr.rel (%p160) target = $region28
      $region27: #{tpu_custom_call.1} parent=5 // pred_region
        %s164 = ssub.s32 %s17, 1
        %s165 = sand.u32 %s30, 1
        %s166 = scalar_lea.sflag [#allocation3], %s165
        %s167 = sand.u32 %s30, 1
        %s168 = smul.addr %s167, 16
        %s169 = scalar_lea.vmem [#allocation2], %s168
        // Predicated region
        $region29: #{tpu_custom_call.1} parent=27 // pred_check
          %p170 = pneg %p43
        $region30: #{tpu_custom_call.1} parent=27 // pred_check_branch
          %172 = sbr.rel (%p170) target = $region32
        $region31: #{tpu_custom_call.1} parent=27 // pred_region
          %174 = dma.done %s166, 256
        $region32: #{tpu_custom_call.1} parent=27 // pred_fallthru
          _
        %s175 = sand.u32 %s56, 1
        %s176 = scalar_lea.sflag [#allocation6], %s175
        %s177 = sand.u32 %s56, 1
        %s178 = smul.addr %s177, 16
        %s179 = scalar_lea.vmem [#allocation5], %s178
        // Predicated region
        $region33: #{tpu_custom_call.1} parent=27 // pred_check
          %p180 = pneg %p69
        $region34: #{tpu_custom_call.1} parent=27 // pred_check_branch
          %182 = sbr.rel (%p180) target = $region36
        $region35: #{tpu_custom_call.1} parent=27 // pred_region
          %184 = dma.done %s176, 256
        $region36: #{tpu_custom_call.1} parent=27 // pred_fallthru
          _
        %s185 = sand.u32 %s30, 1
        %s186 = scalar_lea.sflag [#allocation3], %s185
        %s187 = sand.u32 %s30, 1
        %s188 = smul.addr %s187, 16
        %s189 = scalar_lea.vmem [#allocation2], %s188
        %p190 = pneg %p43
        %p191 = pneg %p40
        %s192 = sand.u32 %s56, 1
        %s193 = scalar_lea.sflag [#allocation6], %s192
        %s194 = sand.u32 %s56, 1
        %s195 = smul.addr %s194, 16
        %s196 = scalar_lea.vmem [#allocation5], %s195
        %p197 = pneg %p69
        %p198 = pneg %p66
        %p199 = pneg %p95
        %p200 = pneg %p92
        %s201 = sand.u32 %s82, 1
        %s202 = scalar_lea.sflag [#allocation4], %s201
        %s203 = sand.u32 %s82, 1
        %s204 = smul.addr %s203, 8
        %s205 = scalar_lea.vmem [#allocation7], %s204
        %s206 = smul.u32 2, %s22
        %s207 = smul.u32 2, %s22
        %v208 = vld [vmem:[%s169] sm:$0xff]
        %v209 = vld [vmem:[%s169 + $0x8] sm:$0xff]
        %v210 = vld [vmem:[%s179] sm:$0xff]
        %v211 = vld [vmem:[%s179 + $0x8] sm:$0xff]
        %v212 = vsub.f32 %v208, %v210
        %v213 = vsub.f32 %v209, %v211
        %v214 = vand.u32 2147483647, %v212
        %v215 = vand.u32 2147483647, %v213
        %v216 = vadd.f32 %v214, %v215
        %217 = vst [vmem:[%s205] sm:$0xff] %v216
        %s218 = sand.u32 %s82, 1
        %s219 = scalar_lea.sflag [#allocation4], %s218
        %s220 = sand.u32 %s82, 1
        %s221 = smul.addr %s220, 8
        %s222 = scalar_lea.vmem [#allocation7], %s221
        // Predicated region
        $region37: #{tpu_custom_call.1} parent=27 // pred_check
          %p223 = pneg %p92
        $region38: #{tpu_custom_call.1} parent=27 // pred_check_branch
          %225 = sbr.rel (%p223) target = $region40
        $region39: #{tpu_custom_call.1} parent=27 // pred_region
          %227 = vsyncadd %s219, 0
          %s228 = smul.addr %s22, 8
          %s229 = scalar_lea.hbm %s2, %s228
          %s231 = sshll.u32 %s222, 4
          %s232 = int_to_ptr.vmem [resolvable:$true] %s231
          %s233 = sshll.u32 %s229, 4
          %s234 = int_to_ptr.hbm [resolvable:$true] %s233
          %236 = dma.vmem_to_hbm [thread:$0]  %s232, 128, %s234, %s219
        $region40: #{tpu_custom_call.1} parent=27 // pred_fallthru
          _
      $region28: #{tpu_custom_call.1} parent=5 // pred_fallthru
        _
      %p237 = scmp.le.s32.totalorder 2, %s17
      // Predicated region
      $region41: #{tpu_custom_call.1} parent=5 // pred_check
        %p238 = pneg %p237
      $region42: #{tpu_custom_call.1} parent=5 // pred_check_branch
        %240 = sbr.rel (%p238) target = $region44
      $region43: #{tpu_custom_call.1} parent=5 // pred_region
        %s241 = ssub.s32 %s17, 2
        // Predicated region
        $region45: #{tpu_custom_call.1} parent=43 // pred_check
          %p242 = pneg %p98
        $region46: #{tpu_custom_call.1} parent=43 // pred_check_branch
          %244 = sbr.rel (%p242) target = $region48
        $region47: #{tpu_custom_call.1} parent=43 // pred_region
          %s245 = sand.u32 %s83, 1
          %s246 = scalar_lea.sflag [#allocation4], %s245
          %s247 = sand.u32 %s83, 1
          %s248 = smul.addr %s247, 8
          %s249 = scalar_lea.vmem [#allocation7], %s248
          %251 = dma.done %s246, 128
        $region48: #{tpu_custom_call.1} parent=43 // pred_fallthru
          _
      $region44: #{tpu_custom_call.1} parent=5 // pred_fallthru
        _
    $region6: #{tpu_custom_call.1} parent=1 // loop_footer
      %s21 = sadd.s32 1, %s17
    $region7: #{tpu_custom_call.1} parent=1 // loop_footer_branch
      %16 = sbr.rel target = $region3
    $region8: #{tpu_custom_call.1} parent=1 // loop_exit
      _
    %252 = vsyncpa [#allocation3], 1
    %s253 = scalar_lea.sflag [#allocation3], 1
    %254 = vsyncpa %s253, 1
    %255 = vsyncpa [#allocation6], 1
    %s256 = scalar_lea.sflag [#allocation6], 1
    %257 = vsyncpa %s256, 1
    %258 = vsyncpa [#allocation4], 1
    %s259 = scalar_lea.sflag [#allocation4], 1
    %260 = vsyncpa %s259, 1

</llo_original>
